<compile_context>
chip_gen: v6e
topology: v6e:2x2x1
jax: 0.10.0
libtpu: 0.0.40
codegen_flags: <defaults>
</compile_context>

<pallas_src>
import functools

import jax
import jax.numpy as jnp
from jax.experimental import pallas as pl
from jax.experimental.pallas import tpu as pltpu


def attention_kernel(x_ref, w_ref, b_ref, o_ref):
    # x_ref: (tb, F), w_ref: (F, H), b_ref: (1, H), o_ref: (tb, H)
    logits = jnp.dot(x_ref[...], w_ref[...],
                     preferred_element_type=jnp.float32) + b_ref[...]
    # Numerically stable softmax over the hidden axis (PyTorch Softmax(dim=1)).
    m = jnp.max(logits, axis=-1, keepdims=True)
    e = jnp.exp(logits - m)
    denom = jnp.sum(e, axis=-1, keepdims=True)
    # Exact normalization (rows sum to 1 to f32 precision); the divide is on a
    # (tb, 1) vector so it costs essentially nothing.
    o_ref[...] = (e * (1.0 / denom)).astype(o_ref.dtype)


@functools.partial(jax.jit, static_argnames=("block_b",))
def attention_module(x, w, b, *, block_b=2048):
    """softmax(x @ w + b, axis=1).  x: (B, F), w: (F, H), b: (H,)."""
    B, F = x.shape
    H = w.shape[1]

    xf = x.astype(jnp.float32)            # no-op for f32 inputs
    wf = w.astype(jnp.float32)
    bf = b.astype(jnp.float32).reshape(1, H)

    if B <= block_b:
        # Small-batch path: single no-grid call, everything VMEM-resident.
        out = pl.pallas_call(
            attention_kernel,
            out_shape=jax.ShapeDtypeStruct((B, H), jnp.float32),
            in_specs=[
                pl.BlockSpec(memory_space=pltpu.MemorySpace.VMEM),
                pl.BlockSpec(memory_space=pltpu.MemorySpace.VMEM),
                pl.BlockSpec(memory_space=pltpu.MemorySpace.VMEM),
            ],
            out_specs=pl.BlockSpec(memory_space=pltpu.MemorySpace.VMEM),
        )(xf, wf, bf)
    else:
        # Large-batch path: tile the batch axis only.  Full F and H stay in each
        # block (both equal the array dims, so the (8,128) rule is satisfied and
        # the softmax reduction stays local).  cdiv grid: the last partial tile's
        # out-of-range rows are masked on writeback, so x is never padded/copied.
        tb = block_b
        out = pl.pallas_call(
            attention_kernel,
            out_shape=jax.ShapeDtypeStruct((B, H), jnp.float32),
            grid=(pl.cdiv(B, tb),),
            in_specs=[
                pl.BlockSpec((tb, F), lambda i: (i, 0)),
                pl.BlockSpec((F, H), lambda i: (0, 0)),   # weights re-used each step
                pl.BlockSpec((1, H), lambda i: (0, 0)),
            ],
            out_specs=pl.BlockSpec((tb, H), lambda i: (i, 0)),
            compiler_params=pltpu.CompilerParams(
                dimension_semantics=("parallel",)),       # megacore-shard batch on v7x
        )(xf, wf, bf)

    return out.astype(x.dtype)


if __name__ == "__main__":
    hidden_size = 64
    batch = 8
    in_features = 32   # LazyLinear infers this from the input

    key = jax.random.PRNGKey(0)
    kx, kw, kb = jax.random.split(key, 3)

    x = jax.random.normal(kx, (batch, in_features), dtype=jnp.float32)

    # Deterministic parameter init (PyTorch Linear-style uniform bounds).
    bound = 1.0 / (in_features ** 0.5)
    w = jax.random.uniform(kw, (in_features, hidden_size),
                           minval=-bound, maxval=bound, dtype=jnp.float32)
    b = jax.random.uniform(kb, (hidden_size,),
                           minval=-bound, maxval=bound, dtype=jnp.float32)

    # Small-shape path (single no-grid call).
    out = jax.block_until_ready(attention_module(x, w, b))

    ref = jax.nn.softmax(x @ w + b, axis=1)
    assert out.shape == (batch, hidden_size)
    assert jnp.allclose(out, ref, atol=1e-3, rtol=1e-3)
    # Exact normalization now -> rows sum to 1 tightly.
    assert jnp.allclose(jnp.sum(out, axis=1), 1.0, atol=1e-4)

    # Exercise the batch-tiled "parallel" grid path on a ragged B (partial tile).
    x2 = jax.random.normal(jax.random.PRNGKey(1), (260, in_features),
                           dtype=jnp.float32)
    out2 = jax.block_until_ready(attention_module(x2, w, b, block_b=128))
    ref2 = jax.nn.softmax(x2 @ w + b, axis=1)
    assert out2.shape == (260, hidden_size)
    assert jnp.allclose(out2, ref2, atol=1e-3, rtol=1e-3)
    assert jnp.allclose(jnp.sum(out2, axis=1), 1.0, atol=1e-4)

    print("KERNEL_OK")
</pallas_src>

<mosaic_0001>
module attributes {stable_mosaic.version = 11 : i64} {
  func.func @attention_kernel(%arg0: memref<8x32xf32, #tpu.memory_space<vmem>>, %arg1: memref<32x64xf32, #tpu.memory_space<vmem>>, %arg2: memref<1x64xf32, #tpu.memory_space<vmem>>, %arg3: memref<8x64xf32, #tpu.memory_space<vmem>>) attributes {dimension_semantics = [], scalar_prefetch = 0 : i64, scratch_operands = 0 : i64, tpu.core_type = #tpu.core_type<tc>} {
    %c0 = arith.constant 0 : index
    %c0_0 = arith.constant 0 : index
    %0 = vector.load %arg0[%c0, %c0_0] : memref<8x32xf32, #tpu.memory_space<vmem>>, vector<8x32xf32>
    %c0_1 = arith.constant 0 : index
    %c0_2 = arith.constant 0 : index
    %1 = vector.load %arg1[%c0_1, %c0_2] : memref<32x64xf32, #tpu.memory_space<vmem>>, vector<32x64xf32>
    %cst = arith.constant dense<0.000000e+00> : vector<8x64xf32>
    %2 = tpu.matmul %0, %1, %cst {dimension_numbers = #tpu.dot_dimension_numbers<[1], [0], [0], [1], [0, 0, 1, 1], [], []>} : vector<8x32xf32>, vector<32x64xf32>, vector<8x64xf32> -> vector<8x64xf32>
    %c0_3 = arith.constant 0 : index
    %c0_4 = arith.constant 0 : index
    %3 = vector.load %arg2[%c0_3, %c0_4] : memref<1x64xf32, #tpu.memory_space<vmem>>, vector<1x64xf32>
    %4 = vector.broadcast %3 : vector<1x64xf32> to vector<8x64xf32>
    %5 = arith.addf %2, %4 : vector<8x64xf32>
    %cst_5 = arith.constant dense<0xFF800000> : vector<8xf32>
    %6 = vector.multi_reduction <maximumf>, %5, %cst_5 [1] : vector<8x64xf32> to vector<8xf32>
    %7 = vector.shape_cast %6 : vector<8xf32> to vector<8x1xf32>
    %8 = vector.broadcast %7 : vector<8x1xf32> to vector<8x64xf32>
    %9 = arith.subf %5, %8 : vector<8x64xf32>
    %10 = math.exp %9 : vector<8x64xf32>
    %cst_6 = arith.constant dense<0.000000e+00> : vector<8xf32>
    %11 = vector.multi_reduction <add>, %10, %cst_6 [1] : vector<8x64xf32> to vector<8xf32>
    %12 = vector.shape_cast %11 : vector<8xf32> to vector<8x1xf32>
    %cst_7 = arith.constant 1.000000e+00 : f32
    %13 = vector.broadcast %cst_7 : f32 to vector<8x1xf32>
    %14 = arith.divf %13, %12 : vector<8x1xf32>
    %15 = vector.broadcast %14 : vector<8x1xf32> to vector<8x64xf32>
    %16 = arith.mulf %10, %15 : vector<8x64xf32>
    %c0_8 = arith.constant 0 : index
    %c0_9 = arith.constant 0 : index
    %17 = vector.load %arg3[%c0_8, %c0_9] : memref<8x64xf32, #tpu.memory_space<vmem>>, vector<8x64xf32>
    tpu.vector_store %arg3[%c0_8, %c0_9], %16 {strides = array<i32>} : memref<8x64xf32, #tpu.memory_space<vmem>>, vector<8x64xf32>,
    return
  }
}

</mosaic_0001>

<llo_original>
// kernel: attention_module.1
$region0: #{attention_module.1}
  #allocation0 [shape = 'u32[]', space=smem, size = 0x4, offset = 0x4, fixed_abs, tag = 'smem constant byte address 0x4 - core index']
  #allocation1 [shape = 'u32[144,128]{1,0:T(1,128)}', space=vmem, size = 0x12000, scoped, tag = 'internal scratch']
  %s0 = inlined_call_operand.hbm [shape: f32[8,32], index: 0, kind: input, shape index: {}]
  %s1 = inlined_call_operand.hbm [shape: f32[32,64], index: 1, kind: input, shape index: {}]
  %s2 = inlined_call_operand.vmem [shape: f32[1,64], index: 2, kind: input, shape index: {}]
  %s3 = inlined_call_operand.hbm [shape: f32[8,64], index: 3, kind: output, shape index: {}]
  %s4 = sld [smem:[#allocation0]]
  $region30: #{attention_module.1} parent=0
    _
  %s6 = ssub.s32 1, %s4
  %s7 = scalar_select 0, %s6, %s4
  $region1: #{attention_module.1} parent=0
    #allocation2 [shape = 'u8[4096]{0}', space=vmem, size = 0x1000, scoped, tag = 'input window, operand 0, single buffered']
    #allocation3 [shape = 's32[1]{0}', space=sflag, size = 0x4, scoped, tag = 'scoped memory for attention_module.1']
    #allocation4 [shape = 's32[1]{0}', space=sflag, size = 0x4, scoped, tag = 'scoped memory for attention_module.1']
    #allocation5 [shape = 'u8[16384]{0}', space=vmem, size = 0x4000, scoped, tag = 'input window, operand 1, single buffered']
    #allocation6 [shape = 's32[1]{0}', space=sflag, size = 0x4, scoped, tag = 'scoped memory for attention_module.1']
    #allocation7 [shape = 'u8[4096]{0}', space=vmem, size = 0x1000, scoped, tag = 'output window, operand 0, single buffered']
    %8 = vsyncpa [#allocation3], 0
    %9 = vsyncpa [#allocation6], 0
    %10 = vsyncpa [#allocation4], 0
    // Predicated region
    $region2: #{attention_module.1} parent=1 // pred_check
      _
    $region3: #{attention_module.1} parent=1 // pred_check_branch
      %12 = sbr.rel (0) target = $region5
    $region4: #{attention_module.1} parent=1 // pred_region
      %s14 = ssub.s32 128, 128
      %15 = vsyncadd [#allocation3], %s14
      %s17 = sshll.u32 [#allocation2], 4
      %s18 = int_to_ptr.vmem [resolvable:$true] %s17
      %20 = dma.hbm_to_vmem [thread:$0]  %s0, 128, %s18, [#allocation3]
    $region5: #{attention_module.1} parent=1 // pred_fallthru
      _
    // Predicated region
    $region6: #{attention_module.1} parent=1 // pred_check
      _
    $region7: #{attention_module.1} parent=1 // pred_check_branch
      %22 = sbr.rel (0) target = $region9
    $region8: #{attention_module.1} parent=1 // pred_region
      %s24 = ssub.s32 512, 512
      %25 = vsyncadd [#allocation6], %s24
      %s26 = sshll.u32 [#allocation5], 4
      %s27 = int_to_ptr.vmem [resolvable:$true] %s26
      %32 = dma.hbm_to_vmem [thread:$0]  %s1, 512, %s27, [#allocation6], 128, 128, 8
    $region9: #{attention_module.1} parent=1 // pred_fallthru
      _
    // Predicated region
    $region10: #{attention_module.1} parent=1 // pred_check
      _
    $region11: #{attention_module.1} parent=1 // pred_check_branch
      %34 = sbr.rel (0) target = $region13
    $region12: #{attention_module.1} parent=1 // pred_region
      _
    $region13: #{attention_module.1} parent=1 // pred_fallthru
      _
    // Predicated region
    $region14: #{attention_module.1} parent=1 // pred_check
      _
    $region15: #{attention_module.1} parent=1 // pred_check_branch
      %36 = sbr.rel (0) target = $region17
    $region16: #{attention_module.1} parent=1 // pred_region
      %37 = dma.done [#allocation3], 128
    $region17: #{attention_module.1} parent=1 // pred_fallthru
      _
    // Predicated region
    $region18: #{attention_module.1} parent=1 // pred_check
      _
    $region19: #{attention_module.1} parent=1 // pred_check_branch
      %39 = sbr.rel (0) target = $region21
    $region20: #{attention_module.1} parent=1 // pred_region
      %40 = dma.done [#allocation6], 512
    $region21: #{attention_module.1} parent=1 // pred_fallthru
      _
    %v41 = vld [vmem:[#allocation2] sm:$0xff]
    %v42 = vld [vmem:[#allocation5] sm:$0xff]
    %v43 = vld [vmem:[#allocation5 + $0x8] sm:$0xff]
    %v44 = vld [vmem:[#allocation5 + $0x10] sm:$0xff]
    %v45 = vld [vmem:[#allocation5 + $0x18] sm:$0xff]
    %v46 = vld [vmem:[%s2] sm:$0x1]
    %v48 = vlaneseq
    %v49 = vshrl.u32 %v48, 7
    %v50 = vsub.s32 0, %v49
    %v51 = vrot.slane %v46, %v50
    %vm53 = vcmask 261120
    %v55 = vsel %vm53, %v41, 0
    %57 = vmatprep.subr.mxu0 0.0
    %58 = vmatpush1.msra.mxu0 0.0
    %59 = vmatprep.subr.mxu0 0.0
    %60 = vmatpush1.msra.mxu0 0.0
    %61 = vmatprep.subr.mxu0 0.0
    %62 = vmatpush1.msra.mxu0 0.0
    %63 = vmatprep.subr.mxu0 0.0
    %64 = vmatpush1.msra.mxu0 0.0
    %65 = vmatprep.subr.mxu0 0.0
    %66 = vmatpush1.msra.mxu0 0.0
    %67 = vmatprep.subr.mxu0 0.0
    %68 = vmatpush1.msra.mxu0 0.0
    %69 = vmatprep.subr.mxu0 0.0
    %70 = vmatpush1.msra.mxu0 0.0
    %71 = vmatprep.subr.mxu0 0.0
    %72 = vmatpush1.msra.mxu0 0.0
    %73 = vmatprep.subr.mxu0 0.0
    %74 = vmatpush1.msra.mxu0 0.0
    %75 = vmatprep.subr.mxu0 0.0
    %76 = vmatpush1.msra.mxu0 0.0
    %77 = vmatprep.subr.mxu0 0.0
    %78 = vmatpush1.msra.mxu0 0.0
    %79 = vmatprep.subr.mxu0 0.0
    %80 = vmatpush1.msra.mxu0 0.0
    %81 = vmatprep.subr.mxu0 0.0
    %82 = vmatpush1.msra.mxu0 %v45
    %83 = vmatprep.subr.mxu0 0.0
    %84 = vmatpush1.msra.mxu0 %v44
    %85 = vmatprep.subr.mxu0 0.0
    %86 = vmatpush1.msra.mxu0 %v43
    %87 = vmatprep.subr.mxu0 0.0
    %88 = vmatpush1.msra.mxu0 %v42
    %89 = vmatprep.subr.mxu0 0.0
    %90 = vmatpush2.msra.mxu0 0.0
    %91 = vmatprep.subr.mxu0 0.0
    %92 = vmatpush2.msra.mxu0 0.0
    %93 = vmatprep.subr.mxu0 0.0
    %94 = vmatpush2.msra.mxu0 0.0
    %95 = vmatprep.subr.mxu0 0.0
    %96 = vmatpush2.msra.mxu0 0.0
    %97 = vmatprep.subr.mxu0 0.0
    %98 = vmatpush2.msra.mxu0 0.0
    %99 = vmatprep.subr.mxu0 0.0
    %100 = vmatpush2.msra.mxu0 0.0
    %101 = vmatprep.subr.mxu0 0.0
    %102 = vmatpush2.msra.mxu0 0.0
    %103 = vmatprep.subr.mxu0 0.0
    %104 = vmatpush2.msra.mxu0 0.0
    %105 = vmatprep.subr.mxu0 0.0
    %106 = vmatpush2.msra.mxu0 0.0
    %107 = vmatprep.subr.mxu0 0.0
    %108 = vmatpush2.msra.mxu0 0.0
    %109 = vmatprep.subr.mxu0 0.0
    %110 = vmatpush2.msra.mxu0 0.0
    %111 = vmatprep.subr.mxu0 0.0
    %112 = vmatpush2.msra.mxu0 0.0
    %113 = vmatprep.subr.mxu0 0.0
    %114 = vmatpush2.msra.mxu0 0.0
    %115 = vmatprep.subr.mxu0 0.0
    %116 = vmatpush2.msra.mxu0 0.0
    %117 = vmatprep.subr.mxu0 0.0
    %118 = vmatpush2.msra.mxu0 0.0
    %119 = vmatprep.subr.mxu0 0.0
    %120 = vmatpush2.msra.mxu0 0.0
    %121 = vmatprep.mubr.f32.mxu0 0.0
    %122 = vmatmul.mubr.f32.gmra.mxu0 %v55
    %v123 = vpop.f32.mrf.mxu0
    %v124 = vadd.f32 %v51, %v123
    %v125 = vpop.f32.mrf.mxu0
    %126 = vdwg.mxu0
    %vm127 = vcmask 523264
    %v128 = vsel %vm127, %v124, -inf
    %129 = vmax.xlane.f32.xlu0 %v128
    %v130 = vpop.xlane.xlu0 %129
    %v131 = vsub.f32 %v124, %v130
    %v132 = vmul.f32 %v131, 1.442695
    %v133 = vpow.pop %v132
    %v134 = vsel %vm127, %v133, 0.0
    %135 = vadd.xlane.f32.xlu0 %v134
    %v136 = vpop.xlane.xlu0 %135
    %v137 = vrcp.pop %v136
    %v138 = vmul.f32 1.0, %v137
    %v139 = vmul.f32 %v133, %v138
    %140 = vst.msk [vmem:[#allocation7] sm:$0xff] %vm127, %v139
    // Predicated region
    $region22: #{attention_module.1} parent=1 // pred_check
      _
    $region23: #{attention_module.1} parent=1 // pred_check_branch
      %142 = sbr.rel (0) target = $region25
    $region24: #{attention_module.1} parent=1 // pred_region
      %s144 = ssub.s32 128, 128
      %145 = vsyncadd [#allocation4], %s144
      %s147 = sshll.u32 [#allocation7], 4
      %s148 = int_to_ptr.vmem [resolvable:$true] %s147
      %150 = dma.vmem_to_hbm [thread:$0]  %s148, 128, %s3, [#allocation4]
    $region25: #{attention_module.1} parent=1 // pred_fallthru
      _
    // Predicated region
    $region26: #{attention_module.1} parent=1 // pred_check
      _
    $region27: #{attention_module.1} parent=1 // pred_check_branch
      %152 = sbr.rel (0) target = $region29
    $region28: #{attention_module.1} parent=1 // pred_region
      %153 = dma.done [#allocation4], 128
    $region29: #{attention_module.1} parent=1 // pred_fallthru
      _
    %154 = vsyncpa [#allocation3], 1
    %155 = vsyncpa [#allocation6], 1
    %156 = vsyncpa [#allocation4], 1

</llo_original>
